<compile_context>
chip_gen: v6e
topology: v6e:2x2x1
jax: 0.10.0
libtpu: 0.0.40
codegen_flags: <defaults>
</compile_context>

<pallas_src>
import jax
import jax.numpy as jnp
from jax.experimental import pallas as pl
from jax.experimental.pallas import tpu as pltpu

SIZE = 0.4
LANE = 128          # lane width (last dim of every block)
BR_MAX = 2048       # max sublane-rows per block -> 3*2048*128*4 B = 3 MiB input block


def box_udf_kernel(pts_ref, out_ref):
    # pts_ref: (3, BR, LANE) float32, out_ref: (BR, LANE) float32
    s = jnp.float32(SIZE)

    # Per-axis slab coordinates: q_i = |p_i| - s.
    qx = jnp.abs(pts_ref[0]) - s
    qy = jnp.abs(pts_ref[1]) - s
    qz = jnp.abs(pts_ref[2]) - s

    zero = jnp.zeros_like(qx)

    # Exterior distance: L2 norm of the positive parts.
    ex = jnp.maximum(qx, zero)
    ey = jnp.maximum(qy, zero)
    ez = jnp.maximum(qz, zero)
    exterior = jnp.sqrt(ex * ex + ey * ey + ez * ez)

    # Interior distance: s - max|p| == -max(q).  Valid iff all q_i < 0.
    qmax = jnp.maximum(jnp.maximum(qx, qy), qz)

    out_ref[...] = jnp.where(qmax < jnp.float32(0.0), -qmax, exterior)


def _round_up(a, b):
    return ((a + b - 1) // b) * b


def _pick_block_rows(r_needed):
    """Choose (block_rows, total_rows): largest block with <~10% padding waste
    that still yields >=2 grid steps (so v7x can use both TensorCores)."""
    r8 = _round_up(max(r_needed, 1), 8)
    for br in (2048, 1024, 512, 256, 128, 64, 32, 16, 8):
        if br > BR_MAX:
            continue
        r_total = _round_up(r8, br)
        steps = r_total // br
        waste = (r_total - r8) / r_total
        if waste <= 0.10 and (steps >= 2 or r8 <= 8):
            return br, r_total
    return 8, _round_up(r8, 8)


def capudf_forward_planar(points_planar):
    """Fast path. points_planar: (3, N) float32 -> (N,) float32 box UDF."""
    pts = points_planar.astype(jnp.float32)
    n = pts.shape[1]

    r_needed = pl.cdiv(max(n, 1), LANE)
    br, r_total = _pick_block_rows(r_needed)
    n_pad = r_total * LANE

    # Pad the lane axis only (no transpose pass), then view as (3, R, 128).
    pts = jnp.pad(pts, ((0, 0), (0, n_pad - n))).reshape(3, r_total, LANE)

    out = pl.pallas_call(
        box_udf_kernel,
        out_shape=jax.ShapeDtypeStruct((r_total, LANE), jnp.float32),
        grid=(r_total // br,),
        in_specs=[pl.BlockSpec((3, br, LANE), lambda i: (0, i, 0))],
        out_specs=pl.BlockSpec((br, LANE), lambda i: (i, 0)),
        compiler_params=pltpu.CompilerParams(
            dimension_semantics=("parallel",)
        ),
        cost_estimate=pl.CostEstimate(
            flops=30 * n, transcendentals=n, bytes_accessed=16 * n
        ),
    )(pts)
    return out.reshape(-1)[:n]


def capudf_forward(points):
    """PyTorch-compatible interface. points: (N, 3) float32 -> (N,) float32.

    Transposes the small (n, 3) array before padding; prefer
    capudf_forward_planar (3, N) upstream to avoid this extra HBM pass."""
    return capudf_forward_planar(points.astype(jnp.float32).T)


def capudf_forward_ref(points):
    """Pure-JAX reference mirroring the PyTorch forward, for verification."""
    s = jnp.float32(SIZE)
    points = points.astype(jnp.float32)
    x, y, z = points[:, 0], points[:, 1], points[:, 2]
    xu, xd = x >= s, x <= -s
    yu, yd = y >= s, y <= -s
    zu, zd = z >= s, z <= -s
    xm = ~(xu | xd)
    ym = ~(yu | yd)
    zm = ~(zu | zd)
    dx = jnp.where(xu, x - s, jnp.where(xd, x + s, 0.0))
    dy = jnp.where(yu, y - s, jnp.where(yd, y + s, 0.0))
    dz = jnp.where(zu, z - s, jnp.where(zd, z + s, 0.0))
    exterior = jnp.sqrt(dx * dx + dy * dy + dz * dz)
    interior = jnp.min(
        jnp.stack(
            [jnp.abs(x - s), jnp.abs(y - s), jnp.abs(z - s), x + s, y + s, z + s],
            axis=1,
        ),
        axis=1,
    )
    return jnp.where(xm & ym & zm, interior, exterior)


if __name__ == "__main__":
    key = jax.random.PRNGKey(0)

    # Small test (not a multiple of 128, exercises padding + single block).
    n = 200
    pts = jax.random.uniform(key, (n, 3), minval=-1.0, maxval=1.0, dtype=jnp.float32)
    res = capudf_forward(pts)
    jax.block_until_ready(res)
    ref = capudf_forward_ref(pts)
    assert res.shape == (n,)
    assert jnp.allclose(res, ref, atol=1e-6, rtol=1e-6)

    # Second test: enough points to exercise a multi-step grid, via both the
    # (N, 3) interface and the planar (3, N) fast path.
    n2 = 33000
    pts2 = jax.random.uniform(
        jax.random.PRNGKey(0), (n2, 3), minval=-1.0, maxval=1.0, dtype=jnp.float32
    )
    ref2 = capudf_forward_ref(pts2)

    res2 = capudf_forward(pts2)
    jax.block_until_ready(res2)
    assert res2.shape == (n2,)
    assert jnp.allclose(res2, ref2, atol=1e-6, rtol=1e-6)

    res2p = capudf_forward_planar(pts2.T)
    jax.block_until_ready(res2p)
    assert res2p.shape == (n2,)
    assert jnp.allclose(res2p, ref2, atol=1e-6, rtol=1e-6)

    print("KERNEL_OK")
</pallas_src>

<mosaic_0001>
module attributes {stable_mosaic.version = 11 : i64} {
  func.func @box_udf_kernel(%arg0: i32, %arg1: memref<3x8x128xf32, #tpu.memory_space<vmem>>, %arg2: memref<8x128xf32, #tpu.memory_space<vmem>>) attributes {dimension_semantics = [#tpu.dimension_semantics<parallel>], iteration_bounds = array<i64: 1>, scalar_prefetch = 0 : i64, scratch_operands = 0 : i64, tpu.core_type = #tpu.core_type<tc>, window_params = [{transform_indices = @transform_0, window_bounds = array<i64: 3, 8, 128>}, {transform_indices = @transform_1, window_bounds = array<i64: 8, 128>}]} {
    %c0 = arith.constant 0 : index
    %c0_0 = arith.constant 0 : index
    %c0_1 = arith.constant 0 : index
    %0 = vector.load %arg1[%c0, %c0_0, %c0_1] : memref<3x8x128xf32, #tpu.memory_space<vmem>>, vector<1x8x128xf32>
    %1 = vector.shape_cast %0 : vector<1x8x128xf32> to vector<8x128xf32>
    %2 = math.absf %1 : vector<8x128xf32>
    %cst = arith.constant 4.000000e-01 : f32
    %3 = vector.broadcast %cst : f32 to vector<8x128xf32>
    %4 = arith.subf %2, %3 : vector<8x128xf32>
    %c1 = arith.constant 1 : index
    %c0_2 = arith.constant 0 : index
    %c0_3 = arith.constant 0 : index
    %5 = vector.load %arg1[%c1, %c0_2, %c0_3] : memref<3x8x128xf32, #tpu.memory_space<vmem>>, vector<1x8x128xf32>
    %6 = vector.shape_cast %5 : vector<1x8x128xf32> to vector<8x128xf32>
    %7 = math.absf %6 : vector<8x128xf32>
    %cst_4 = arith.constant 4.000000e-01 : f32
    %8 = vector.broadcast %cst_4 : f32 to vector<8x128xf32>
    %9 = arith.subf %7, %8 : vector<8x128xf32>
    %c2 = arith.constant 2 : index
    %c0_5 = arith.constant 0 : index
    %c0_6 = arith.constant 0 : index
    %10 = vector.load %arg1[%c2, %c0_5, %c0_6] : memref<3x8x128xf32, #tpu.memory_space<vmem>>, vector<1x8x128xf32>
    %11 = vector.shape_cast %10 : vector<1x8x128xf32> to vector<8x128xf32>
    %12 = math.absf %11 : vector<8x128xf32>
    %cst_7 = arith.constant 4.000000e-01 : f32
    %13 = vector.broadcast %cst_7 : f32 to vector<8x128xf32>
    %14 = arith.subf %12, %13 : vector<8x128xf32>
    %cst_8 = arith.constant 0.000000e+00 : f32
    %15 = vector.broadcast %cst_8 : f32 to vector<8x128xf32>
    %16 = arith.maximumf %4, %15 : vector<8x128xf32>
    %17 = arith.maximumf %9, %15 : vector<8x128xf32>
    %18 = arith.maximumf %14, %15 : vector<8x128xf32>
    %19 = arith.mulf %16, %16 : vector<8x128xf32>
    %20 = arith.mulf %17, %17 : vector<8x128xf32>
    %21 = arith.addf %19, %20 : vector<8x128xf32>
    %22 = arith.mulf %18, %18 : vector<8x128xf32>
    %23 = arith.addf %21, %22 : vector<8x128xf32>
    %24 = math.sqrt %23 : vector<8x128xf32>
    %25 = arith.maximumf %4, %9 : vector<8x128xf32>
    %26 = arith.maximumf %25, %14 : vector<8x128xf32>
    %cst_9 = arith.constant 0.000000e+00 : f32
    %27 = vector.broadcast %cst_9 : f32 to vector<8x128xf32>
    %28 = arith.cmpf olt, %26, %27 : vector<8x128xf32>
    %cst_10 = arith.constant 0.000000e+00 : f32
    %29 = vector.broadcast %cst_10 : f32 to vector<8x128xf32>
    %30 = arith.subf %29, %26 : vector<8x128xf32>
    %31 = arith.select %28, %30, %24 : vector<8x128xi1>, vector<8x128xf32>
    %c0_11 = arith.constant 0 : index
    %c0_12 = arith.constant 0 : index
    %32 = vector.load %arg2[%c0_11, %c0_12] : memref<8x128xf32, #tpu.memory_space<vmem>>, vector<8x128xf32>
    tpu.vector_store %arg2[%c0_11, %c0_12], %31 {strides = array<i32>} : memref<8x128xf32, #tpu.memory_space<vmem>>, vector<8x128xf32>,
    return
  }
  func.func @transform_0(%arg0: i32) -> (i32, i32, i32) {
    %c0_i32 = arith.constant 0 : i32
    %c0_i32_0 = arith.constant 0 : i32
    %c0_i32_1 = arith.constant 0 : i32
    return %c0_i32, %arg0, %c0_i32_0 : i32, i32, i32
  }
  func.func @transform_1(%arg0: i32) -> (i32, i32) {
    %c0_i32 = arith.constant 0 : i32
    %c0_i32_0 = arith.constant 0 : i32
    return %arg0, %c0_i32 : i32, i32
  }
}

</mosaic_0001>

<llo_original>
// kernel: tpu_custom_call.1
$region0: #{tpu_custom_call.1}
  #allocation0 [shape = 'u32[]', space=smem, size = 0x4, offset = 0x4, fixed_abs, tag = 'smem constant byte address 0x4 - core index']
  #allocation1 [shape = 'u32[144,128]{1,0:T(1,128)}', space=vmem, size = 0x12000, scoped, tag = 'internal scratch']
  %s0 = inlined_call_operand.hbm [shape: f32[3,8,128], index: 0, kind: input, shape index: {}]
  %s1 = inlined_call_operand.hbm [shape: f32[8,128], index: 1, kind: output, shape index: {}]
  %s2 = sld [smem:[#allocation0]]
  $region18: #{tpu_custom_call.1} parent=0
    _
  %s4 = ssub.s32 1, %s2
  %s5 = scalar_select 0, %s4, %s2
  $region1: #{tpu_custom_call.1} parent=0
    #allocation2 [shape = 'u8[12288]{0}', space=vmem, size = 0x3000, scoped, tag = 'input window, operand 0, single buffered']
    #allocation3 [shape = 's32[1]{0}', space=sflag, size = 0x4, scoped, tag = 'scoped memory for tpu_custom_call.1']
    #allocation4 [shape = 's32[1]{0}', space=sflag, size = 0x4, scoped, tag = 'scoped memory for tpu_custom_call.1']
    #allocation5 [shape = 'u8[4096]{0}', space=vmem, size = 0x1000, scoped, tag = 'output window, operand 0, single buffered']
    %6 = vsyncpa [#allocation3], 0
    %7 = vsyncpa [#allocation4], 0
    // Predicated region
    $region2: #{tpu_custom_call.1} parent=1 // pred_check
      _
    $region3: #{tpu_custom_call.1} parent=1 // pred_check_branch
      %9 = sbr.rel (0) target = $region5
    $region4: #{tpu_custom_call.1} parent=1 // pred_region
      %s11 = ssub.s32 384, 384
      %12 = vsyncadd [#allocation3], %s11
      %s13 = sshll.u32 [#allocation2], 4
      %s14 = int_to_ptr.vmem [resolvable:$true] %s13
      %19 = dma.hbm_to_vmem [thread:$0]  %s0, 384, %s14, [#allocation3], 128, 128, 8
    $region5: #{tpu_custom_call.1} parent=1 // pred_fallthru
      _
    // Predicated region
    $region6: #{tpu_custom_call.1} parent=1 // pred_check
      _
    $region7: #{tpu_custom_call.1} parent=1 // pred_check_branch
      %21 = sbr.rel (0) target = $region9
    $region8: #{tpu_custom_call.1} parent=1 // pred_region
      %22 = dma.done [#allocation3], 384
    $region9: #{tpu_custom_call.1} parent=1 // pred_fallthru
      _
    %v23 = vld [vmem:[#allocation2] sm:$0xff]
    %v24 = vand.u32 2147483647, %v23
    %v25 = vsub.f32 %v24, 0.4
    %s26 = scalar_lea.vmem [#allocation2], 8
    %v27 = vld [vmem:[%s26] sm:$0xff]
    %v28 = vand.u32 2147483647, %v27
    %v29 = vsub.f32 %v28, 0.4
    %s30 = scalar_lea.vmem [#allocation2], 16
    %v31 = vld [vmem:[%s30] sm:$0xff]
    %v32 = vand.u32 2147483647, %v31
    %v33 = vsub.f32 %v32, 0.4
    %v34 = vmax.f32 %v25, 0.0
    %v35 = vmax.f32 %v29, 0.0
    %v36 = vmax.f32 %v33, 0.0
    %v37 = vmul.f32 %v34, %v34
    %v38 = vmul.f32 %v35, %v35
    %v39 = vadd.f32 %v37, %v38
    %v40 = vmul.f32 %v36, %v36
    %v41 = vadd.f32 %v39, %v40
    %v42 = vrsqrt.pop %v41
    %v43 = vmul.f32 %v41, %v42
    %vm44 = vcmp.eq.f32.partialorder %v41, inf
    %v45 = vsel %vm44, %v41, %v43
    %vm46 = vcmp.eq.f32.partialorder %v41, 0.0
    %v47 = vand.u32 %v41, 2147483648
    %v48 = vsel %vm46, %v47, %v45
    %v49 = vmax.f32 %v25, %v29
    %v50 = vmax.f32 %v49, %v33
    %vm51 = vcmp.lt.f32.partialorder %v50, 0.0
    %v52 = vsub.f32 0.0, %v50
    %v53 = vsel %vm51, %v52, %v48
    %54 = vst [vmem:[#allocation5] sm:$0xff] %v53
    // Predicated region
    $region10: #{tpu_custom_call.1} parent=1 // pred_check
      _
    $region11: #{tpu_custom_call.1} parent=1 // pred_check_branch
      %56 = sbr.rel (0) target = $region13
    $region12: #{tpu_custom_call.1} parent=1 // pred_region
      %s58 = ssub.s32 128, 128
      %59 = vsyncadd [#allocation4], %s58
      %s61 = sshll.u32 [#allocation5], 4
      %s62 = int_to_ptr.vmem [resolvable:$true] %s61
      %64 = dma.vmem_to_hbm [thread:$0]  %s62, 128, %s1, [#allocation4]
    $region13: #{tpu_custom_call.1} parent=1 // pred_fallthru
      _
    // Predicated region
    $region14: #{tpu_custom_call.1} parent=1 // pred_check
      _
    $region15: #{tpu_custom_call.1} parent=1 // pred_check_branch
      %66 = sbr.rel (0) target = $region17
    $region16: #{tpu_custom_call.1} parent=1 // pred_region
      %67 = dma.done [#allocation4], 128
    $region17: #{tpu_custom_call.1} parent=1 // pred_fallthru
      _
    %68 = vsyncpa [#allocation3], 1
    %69 = vsyncpa [#allocation4], 1

</llo_original>
